<compile_context>
chip_gen: v6e
topology: v6e:2x2x1
jax: 0.10.0
libtpu: 0.0.40
codegen_flags: <defaults>
</compile_context>

<pallas_src>
import jax
import jax.numpy as jnp
from jax import lax
from jax.experimental import pallas as pl
from jax.experimental.pallas import tpu as pltpu

BN_EPS = 1e-5
TM = 512                          # lane tile: pixels processed per grid step
VMEM_LIMIT = 32 * 1024 * 1024     # explicit scoped-VMEM budget


def _round_up(x, m):
    return (x + m - 1) // m * m


# ----------------------------- Pallas kernels --------------------------------

def matmul_stats_kernel(w_ref, p_ref, o_ref, sum_ref, sq_ref):
    """out = W @ P for one lane tile, plus fused BN pass-1: per-row sum / sum-of-squares
    accumulated across the (arbitrary) grid axis."""
    acc = jnp.dot(w_ref[...], p_ref[...], preferred_element_type=jnp.float32)
    o_ref[...] = acc.astype(o_ref.dtype)

    @pl.when(pl.program_id(0) == 0)
    def _init():
        sum_ref[...] = jnp.zeros_like(sum_ref)
        sq_ref[...] = jnp.zeros_like(sq_ref)

    sum_ref[...] += jnp.sum(acc, axis=1, keepdims=True)
    sq_ref[...] += jnp.sum(acc * acc, axis=1, keepdims=True)


def scale_shift_relu_kernel(x_ref, s_ref, t_ref, o_ref):
    """BN apply (precomputed per-row scale/shift) + ReLU, per lane tile."""
    y = x_ref[...].astype(jnp.float32) * s_ref[...] + t_ref[...]
    o_ref[...] = jnp.maximum(y, 0.0).astype(o_ref.dtype)


def scale_shift_add_relu_kernel(x_ref, r_ref, sx_ref, tx_ref, sr_ref, tr_ref, o_ref):
    """relu(BN(x) + BN(residual)); an identity residual uses scale=1, shift=0."""
    y = (x_ref[...].astype(jnp.float32) * sx_ref[...] + tx_ref[...]
         + r_ref[...].astype(jnp.float32) * sr_ref[...] + tr_ref[...])
    o_ref[...] = jnp.maximum(y, 0.0).astype(o_ref.dtype)


# ----------------------------- Pallas wrappers --------------------------------

def conv_matmul_stats(w_lhs, patches, tm=TM, out_dtype=jnp.bfloat16):
    """(R, K) @ (K, M) on the MXU, lane-tiled over M, with fused BN-stat accumulation.
    Returns (out (R, M), row_sum (R, 1), row_sumsq (R, 1))."""
    R, K = w_lhs.shape
    Kp = _round_up(K, 8)                      # sublane-align the contraction dim
    if Kp != K:
        w_lhs = jnp.pad(w_lhs, ((0, 0), (0, Kp - K)))
        patches = jnp.pad(patches, ((0, Kp - K), (0, 0)))
    M = patches.shape[1]
    Mp = _round_up(M, tm)
    if Mp != M:                               # zero columns: zero contribution to stats
        patches = jnp.pad(patches, ((0, 0), (0, Mp - M)))

    out, s, sq = pl.pallas_call(
        matmul_stats_kernel,
        out_shape=(jax.ShapeDtypeStruct((R, Mp), out_dtype),
                   jax.ShapeDtypeStruct((R, 1), jnp.float32),
                   jax.ShapeDtypeStruct((R, 1), jnp.float32)),
        grid_spec=pltpu.PrefetchScalarGridSpec(
            num_scalar_prefetch=0,
            grid=(pl.cdiv(Mp, tm),),
            in_specs=[pl.BlockSpec((R, Kp), lambda i: (0, 0)),
                      pl.BlockSpec((Kp, tm), lambda i: (0, i))],
            out_specs=(pl.BlockSpec((R, tm), lambda i: (0, i)),
                       pl.BlockSpec((R, 1), lambda i: (0, 0)),
                       pl.BlockSpec((R, 1), lambda i: (0, 0)))),
        compiler_params=pltpu.CompilerParams(
            dimension_semantics=("arbitrary",),     # stats accumulate across the grid
            vmem_limit_bytes=VMEM_LIMIT),
    )(w_lhs, patches)
    return out[:, :M], s, sq


def bn_relu_apply(x, scale, shift, tm=TM, out_dtype=jnp.bfloat16):
    C, M = x.shape
    Mp = _round_up(M, tm)
    if Mp != M:
        x = jnp.pad(x, ((0, 0), (0, Mp - M)))
    out = pl.pallas_call(
        scale_shift_relu_kernel,
        out_shape=jax.ShapeDtypeStruct((C, Mp), out_dtype),
        grid_spec=pltpu.PrefetchScalarGridSpec(
            num_scalar_prefetch=0,
            grid=(pl.cdiv(Mp, tm),),
            in_specs=[pl.BlockSpec((C, tm), lambda i: (0, i)),
                      pl.BlockSpec((C, 1), lambda i: (0, 0)),
                      pl.BlockSpec((C, 1), lambda i: (0, 0))],
            out_specs=pl.BlockSpec((C, tm), lambda i: (0, i))),
        compiler_params=pltpu.CompilerParams(
            dimension_semantics=("parallel",),
            vmem_limit_bytes=VMEM_LIMIT),
    )(x, scale, shift)
    return out[:, :M]


def bn_add_relu_apply(x, r, sx, tx, sr, tr, tm=TM):
    C, M = x.shape
    Mp = _round_up(M, tm)
    if Mp != M:
        x = jnp.pad(x, ((0, 0), (0, Mp - M)))
        r = jnp.pad(r, ((0, 0), (0, Mp - M)))
    tiled = lambda i: (0, i)
    small = lambda i: (0, 0)
    out = pl.pallas_call(
        scale_shift_add_relu_kernel,
        out_shape=jax.ShapeDtypeStruct((C, Mp), jnp.float32),
        grid_spec=pltpu.PrefetchScalarGridSpec(
            num_scalar_prefetch=0,
            grid=(pl.cdiv(Mp, tm),),
            in_specs=[pl.BlockSpec((C, tm), tiled),
                      pl.BlockSpec((C, tm), tiled),
                      pl.BlockSpec((C, 1), small),
                      pl.BlockSpec((C, 1), small),
                      pl.BlockSpec((C, 1), small),
                      pl.BlockSpec((C, 1), small)],
            out_specs=pl.BlockSpec((C, tm), tiled)),
        compiler_params=pltpu.CompilerParams(
            dimension_semantics=("parallel",),
            vmem_limit_bytes=VMEM_LIMIT),
    )(x, r, sx, tx, sr, tr)
    return out[:, :M]


# ----------------------------- JAX glue (layout / weight packing) ---------------------

def im2col_t(x_cnhw_padded, k):
    """Transposed-layout im2col: x is (C, N, Hp, Wp) already spatially padded;
    returns (k*k*C, N*Ho*Wo) with row order (tap, channel), column order (N, Ho, Wo)."""
    C, N, Hp, Wp = x_cnhw_padded.shape
    Ho, Wo = Hp - k + 1, Wp - k + 1
    cols = [x_cnhw_padded[:, :, a:a + Ho, b:b + Wo]
            for a in range(k) for b in range(k)]
    p = jnp.stack(cols, axis=0)                        # (k*k, C, N, Ho, Wo)
    return p.reshape(k * k * C, N * Ho * Wo), (Ho, Wo)


def _flip_hwio(w):
    """PyTorch ConvTranspose2d weight (Cin, Cout, kh, kw) -> spatially flipped
    (kh, kw, Cin, Cout): the plain-conv kernel of the equivalent convolution."""
    return jnp.transpose(jnp.flip(w, (2, 3)), (2, 3, 0, 1))


def conv3_lhs(w):
    """Stride-1 ConvTranspose (k=3, p=1) == pad-1 3x3 conv. Returns (Cout, 9*Cin) LHS
    matching im2col_t's (tap, channel) row order."""
    wf = _flip_hwio(w)                                 # (3, 3, Cin, Cout)
    Cin, Cout = w.shape[0], w.shape[1]
    return jnp.transpose(wf, (3, 0, 1, 2)).reshape(Cout, 9 * Cin)


def phase_lhs_s2(w):
    """Stride-2 ConvTranspose (k=4, p=1) as four 2x2 sub-convolutions (one per output
    parity phase), expressed over the SAME pad-1 3x3 patch slab used by conv3_lhs:
        out[2m+ph, 2n+pw] = sum_{da,db in {0,1}} xpad[m+da+ph, n+db+pw]
                                                 * wflip[2*da+ph, 2*db+pw]
    Returns (4*Cout, 9*Cin) with row order (ph, pw, cout)."""
    wf = _flip_hwio(w)                                 # (4, 4, Cin, Cout)
    Cin, Cout = w.shape[0], w.shape[1]
    lhs = jnp.zeros((2, 2, Cout, 3, 3, Cin), jnp.float32)
    for ph in range(2):
        for pw in range(2):
            for da in range(2):
                for db in range(2):
                    tap = wf[2 * da + ph, 2 * db + pw]         # (Cin, Cout)
                    lhs = lhs.at[ph, pw, :, da + ph, db + pw, :].set(tap.T)
    return lhs.reshape(4 * Cout, 9 * Cin)


def bn_scale_shift(row_sum, row_sumsq, count, gamma, beta):
    """Training-mode (batch-stat) BatchNorm as a per-channel affine, from f32 sums."""
    mean = row_sum / count
    var = jnp.maximum(row_sumsq / count - mean * mean, 0.0)
    scale = gamma * lax.rsqrt(var + BN_EPS)
    shift = beta - mean * scale
    return (scale.reshape(-1, 1).astype(jnp.float32),
            shift.reshape(-1, 1).astype(jnp.float32))


# ----------------------------- ResidualBlockUp forward --------------------------------

def residual_block_up_forward(x_nchw, p, stride):
    """Forward pass of the PyTorch ResidualBlockUp (training-mode BatchNorm).

    Conv biases are intentionally omitted: every conv is immediately followed by a
    training-mode BatchNorm whose mean subtraction cancels a per-channel bias exactly.
    """
    N, Cin, H, W = x_nchw.shape
    Cout = p["w1"].shape[1]
    has_up = (stride != 1) or (Cin != Cout)

    # channels-first "transposed" layout (C, N, H, W): pixels land on the lane axis.
    xT = jnp.transpose(x_nchw, (1, 0, 2, 3)).astype(jnp.float32)
    xTp = jnp.pad(xT, ((0, 0), (0, 0), (1, 1), (1, 1)))
    P1, _ = im2col_t(xTp, 3)                                  # (9*Cin, N*H*W)
    P1 = P1.astype(jnp.bfloat16)

    # --- stage 1: deconv1 (+ fused upsample-branch deconv) with fused BN stats --------
    if stride == 2:
        lhs_list = [phase_lhs_s2(p["w1"])]
        if has_up:
            lhs_list.append(phase_lhs_s2(p["wu"]))
        W_lhs = jnp.concatenate(lhs_list, axis=0).astype(jnp.bfloat16)  # (nb*4*Cout, 9Cin)
        nb = len(lhs_list)
        out1, s1r, q1r = conv_matmul_stats(W_lhs, P1)
        Ho, Wo = 2 * H, 2 * W
        # de-interleave the four parity phases: rows (nb, ph, pw, Cout), cols (N, H, W)
        o = out1.reshape(nb, 2, 2, Cout, N, H, W)
        o = jnp.transpose(o, (0, 3, 4, 5, 1, 6, 2)).reshape(nb, Cout, N, Ho, Wo)
        sums = s1r.reshape(nb, 2, 2, Cout).sum(axis=(1, 2))             # (nb, Cout)
        sqs = q1r.reshape(nb, 2, 2, Cout).sum(axis=(1, 2))
    else:
        lhs_list = [conv3_lhs(p["w1"])]
        if has_up:
            lhs_list.append(conv3_lhs(p["wu"]))
        W_lhs = jnp.concatenate(lhs_list, axis=0).astype(jnp.bfloat16)  # (nb*Cout, 9Cin)
        nb = len(lhs_list)
        out1, s1r, q1r = conv_matmul_stats(W_lhs, P1)
        Ho, Wo = H, W
        o = out1.reshape(nb, Cout, N, Ho, Wo)
        sums = s1r.reshape(nb, Cout)
        sqs = q1r.reshape(nb, Cout)

    Mo = N * Ho * Wo
    count = float(Mo)

    # bn1 + relu (gridded, lane-tiled)
    sc1, sh1 = bn_scale_shift(sums[0], sqs[0], count, p["g1"], p["be1"])
    h1 = bn_relu_apply(o[0].reshape(Cout, Mo), sc1, sh1)                # (Cout, Mo) bf16

    # --- stage 2: dconv2 (ConvTranspose k=3, s=1, p=1 == pad-1 3x3 conv) ---------------
    h1sp = jnp.pad(h1.reshape(Cout, N, Ho, Wo), ((0, 0), (0, 0), (1, 1), (1, 1)))
    P2, _ = im2col_t(h1sp, 3)                                           # (9*Cout, Mo)
    out2, s2r, q2r = conv_matmul_stats(conv3_lhs(p["w2"]).astype(jnp.bfloat16),
                                       P2.astype(jnp.bfloat16))
    sc2, sh2 = bn_scale_shift(s2r.reshape(-1), q2r.reshape(-1), count,
                              p["g2"], p["be2"])

    # --- residual branch ---------------------------------------------------------------
    if has_up:
        scu, shu = bn_scale_shift(sums[1], sqs[1], count, p["gu"], p["beu"])
        res = o[1].reshape(Cout, Mo)
    else:
        scu = jnp.ones((Cout, 1), jnp.float32)
        shu = jnp.zeros((Cout, 1), jnp.float32)
        res = xT.reshape(Cout, Mo)                    # identity residual (Cin == Cout)

    # --- bn2 + bn_up/identity + add + relu, fused --------------------------------------
    y = bn_add_relu_apply(out2, res, sc2, sh2, scu, shu)                # (Cout, Mo) f32
    return jnp.transpose(y.reshape(Cout, N, Ho, Wo), (1, 0, 2, 3))      # -> NCHW


# ----------------------------- pure-JAX reference (for checking) ----------------------

def reference_forward(x_nchw, raw, stride):
    x = jnp.transpose(x_nchw, (0, 2, 3, 1)).astype(jnp.float32)

    def deconv(xx, w, b, s, k, pad):
        wf = jnp.transpose(jnp.flip(w, (2, 3)), (2, 3, 0, 1))  # HWIO
        y = lax.conv_general_dilated(
            xx, wf, window_strides=(1, 1),
            padding=[(k - 1 - pad, k - 1 - pad)] * 2, lhs_dilation=(s, s),
            dimension_numbers=("NHWC", "HWIO", "NHWC"))
        return y + b

    def bn(xx, g, be):
        mean = xx.mean(axis=(0, 1, 2), keepdims=True)
        var = ((xx - mean) ** 2).mean(axis=(0, 1, 2), keepdims=True)
        return (xx - mean) * lax.rsqrt(var + BN_EPS) * g + be

    k1 = 4 if stride == 2 else 3
    out = deconv(x, raw["w1"], raw["b1"], stride, k1, 1)
    out = jnp.maximum(bn(out, raw["g1"], raw["be1"]), 0.0)
    out = deconv(out, raw["w2"], raw["b2"], 1, 3, 1)
    out = bn(out, raw["g2"], raw["be2"])
    if "wu" in raw:
        res = deconv(x, raw["wu"], raw["bu"], stride, k1, 1)
        res = bn(res, raw["gu"], raw["beu"])
    else:
        res = x
    out = jnp.maximum(out + res, 0.0)
    return jnp.transpose(out, (0, 3, 1, 2))


# ----------------------------- main --------------------------------

def make_params(key, cin, cout, stride):
    k1 = 4 if stride == 2 else 3
    ks = jax.random.split(key, 12)
    f32 = jnp.float32
    p = {
        "w1": 0.1 * jax.random.normal(ks[0], (cin, cout, k1, k1), f32),
        "b1": 0.1 * jax.random.normal(ks[1], (cout,), f32),
        "g1": 1.0 + 0.1 * jax.random.normal(ks[2], (cout,), f32),
        "be1": 0.1 * jax.random.normal(ks[3], (cout,), f32),
        "w2": 0.1 * jax.random.normal(ks[4], (cout, cout, 3, 3), f32),
        "b2": 0.1 * jax.random.normal(ks[5], (cout,), f32),
        "g2": 1.0 + 0.1 * jax.random.normal(ks[6], (cout,), f32),
        "be2": 0.1 * jax.random.normal(ks[7], (cout,), f32),
    }
    if stride != 1 or cin != cout:
        p.update({
            "wu": 0.1 * jax.random.normal(ks[8], (cin, cout, k1, k1), f32),
            "bu": 0.1 * jax.random.normal(ks[9], (cout,), f32),
            "gu": 1.0 + 0.1 * jax.random.normal(ks[10], (cout,), f32),
            "beu": 0.1 * jax.random.normal(ks[11], (cout,), f32),
        })
    return p


if __name__ == "__main__":
    key = jax.random.PRNGKey(0)
    kp1, kx1, kp2, kx2 = jax.random.split(key, 4)

    # Config 1: stride-2 upsampling block (the canonical ResidualBlockUp use).
    N, Cin, Cout, H, W, stride = 2, 4, 8, 16, 16, 2
    params = make_params(kp1, Cin, Cout, stride)
    x = jax.random.normal(kx1, (N, Cin, H, W), jnp.float32)

    out = jax.block_until_ready(residual_block_up_forward(x, params, stride))
    assert out.shape == (N, Cout, H * stride, W * stride), out.shape
    ref = jax.block_until_ready(reference_forward(x, params, stride))
    err = float(jnp.max(jnp.abs(out - ref)))
    assert bool(jnp.allclose(out, ref, atol=3e-2, rtol=3e-2)), err   # bf16 MXU operands

    # Config 2: stride-1, Cin == Cout -> identity residual path (no upsample branch).
    n2, c2, h2, w2 = 2, 8, 10, 10
    params2 = make_params(kp2, c2, c2, 1)
    x2 = jax.random.normal(kx2, (n2, c2, h2, w2), jnp.float32)

    out2 = jax.block_until_ready(residual_block_up_forward(x2, params2, 1))
    assert out2.shape == (n2, c2, h2, w2), out2.shape
    ref2 = jax.block_until_ready(reference_forward(x2, params2, 1))
    err2 = float(jnp.max(jnp.abs(out2 - ref2)))
    assert bool(jnp.allclose(out2, ref2, atol=3e-2, rtol=3e-2)), err2

    print("KERNEL_OK")
</pallas_src>

<mosaic_0001>
module attributes {stable_mosaic.version = 11 : i64} {
  func.func @matmul_stats_kernel(%arg0: i32, %arg1: memref<64x40xbf16, #tpu.memory_space<vmem>>, %arg2: memref<40x512xbf16, #tpu.memory_space<vmem>>, %arg3: memref<64x512xbf16, #tpu.memory_space<vmem>>, %arg4: memref<64x1xf32, #tpu.memory_space<vmem>>, %arg5: memref<64x1xf32, #tpu.memory_space<vmem>>) attributes {dimension_semantics = [#tpu.dimension_semantics<arbitrary>], iteration_bounds = array<i64: 1>, scalar_prefetch = 0 : i64, scratch_operands = 0 : i64, tpu.core_type = #tpu.core_type<tc>, window_params = [{pipeline_mode = #tpu.pipeline_mode<synchronous>, transform_indices = @transform_0, window_bounds = array<i64: 64, 40>}, {transform_indices = @transform_1, window_bounds = array<i64: 40, 512>}, {transform_indices = @transform_2, window_bounds = array<i64: 64, 512>}, {pipeline_mode = #tpu.pipeline_mode<synchronous>, transform_indices = @transform_3, window_bounds = array<i64: 64, 1>}, {pipeline_mode = #tpu.pipeline_mode<synchronous>, transform_indices = @transform_4, window_bounds = array<i64: 64, 1>}]} {
    %c0 = arith.constant 0 : index
    %c0_0 = arith.constant 0 : index
    %0 = vector.load %arg1[%c0, %c0_0] : memref<64x40xbf16, #tpu.memory_space<vmem>>, vector<64x40xbf16>
    %c0_1 = arith.constant 0 : index
    %c0_2 = arith.constant 0 : index
    %1 = vector.load %arg2[%c0_1, %c0_2] : memref<40x512xbf16, #tpu.memory_space<vmem>>, vector<40x512xbf16>
    %cst = arith.constant dense<0.000000e+00> : vector<64x512xf32>
    %2 = tpu.matmul %0, %1, %cst {dimension_numbers = #tpu.dot_dimension_numbers<[1], [0], [0], [1], [0, 0, 1, 1], [], []>} : vector<64x40xbf16>, vector<40x512xbf16>, vector<64x512xf32> -> vector<64x512xf32>
    %3 = arith.truncf %2 : vector<64x512xf32> to vector<64x512xbf16>
    %c0_3 = arith.constant 0 : index
    %c0_4 = arith.constant 0 : index
    %4 = vector.load %arg3[%c0_3, %c0_4] : memref<64x512xbf16, #tpu.memory_space<vmem>>, vector<64x512xbf16>
    tpu.vector_store %arg3[%c0_3, %c0_4], %3 {strides = array<i32>} : memref<64x512xbf16, #tpu.memory_space<vmem>>, vector<64x512xbf16>,
    %c0_i32 = arith.constant 0 : i32
    %5 = arith.cmpi eq, %arg0, %c0_i32 : i32
    %6 = arith.extui %5 : i1 to i32
    %c0_i32_5 = arith.constant 0 : i32
    %7 = arith.cmpi ne, %6, %c0_i32_5 : i32
    scf.if %7 {
      %cst_16 = arith.constant 0.000000e+00 : f32
      %19 = vector.broadcast %cst_16 : f32 to vector<64x1xf32>
      %c0_17 = arith.constant 0 : index
      %c0_18 = arith.constant 0 : index
      %20 = vector.load %arg4[%c0_17, %c0_18] : memref<64x1xf32, #tpu.memory_space<vmem>>, vector<64x1xf32>
      tpu.vector_store %arg4[%c0_17, %c0_18], %19 {strides = array<i32>} : memref<64x1xf32, #tpu.memory_space<vmem>>, vector<64x1xf32>,
      %cst_19 = arith.constant 0.000000e+00 : f32
      %21 = vector.broadcast %cst_19 : f32 to vector<64x1xf32>
      %c0_20 = arith.constant 0 : index
      %c0_21 = arith.constant 0 : index
      %22 = vector.load %arg5[%c0_20, %c0_21] : memref<64x1xf32, #tpu.memory_space<vmem>>, vector<64x1xf32>
      tpu.vector_store %arg5[%c0_20, %c0_21], %21 {strides = array<i32>} : memref<64x1xf32, #tpu.memory_space<vmem>>, vector<64x1xf32>,
    } else {
    }
    %c0_6 = arith.constant 0 : index
    %c0_7 = arith.constant 0 : index
    %8 = vector.load %arg4[%c0_6, %c0_7] : memref<64x1xf32, #tpu.memory_space<vmem>>, vector<64x1xf32>
    %cst_8 = arith.constant dense<0.000000e+00> : vector<64xf32>
    %9 = vector.multi_reduction <add>, %2, %cst_8 [1] : vector<64x512xf32> to vector<64xf32>
    %10 = vector.shape_cast %9 : vector<64xf32> to vector<64x1xf32>
    %11 = arith.addf %8, %10 : vector<64x1xf32>
    %c0_9 = arith.constant 0 : index
    %c0_10 = arith.constant 0 : index
    %12 = vector.load %arg4[%c0_9, %c0_10] : memref<64x1xf32, #tpu.memory_space<vmem>>, vector<64x1xf32>
    tpu.vector_store %arg4[%c0_9, %c0_10], %11 {strides = array<i32>} : memref<64x1xf32, #tpu.memory_space<vmem>>, vector<64x1xf32>,
    %c0_11 = arith.constant 0 : index
    %c0_12 = arith.constant 0 : index
    %13 = vector.load %arg5[%c0_11, %c0_12] : memref<64x1xf32, #tpu.memory_space<vmem>>, vector<64x1xf32>
    %14 = arith.mulf %2, %2 : vector<64x512xf32>
    %cst_13 = arith.constant dense<0.000000e+00> : vector<64xf32>
    %15 = vector.multi_reduction <add>, %14, %cst_13 [1] : vector<64x512xf32> to vector<64xf32>
    %16 = vector.shape_cast %15 : vector<64xf32> to vector<64x1xf32>
    %17 = arith.addf %13, %16 : vector<64x1xf32>
    %c0_14 = arith.constant 0 : index
    %c0_15 = arith.constant 0 : index
    %18 = vector.load %arg5[%c0_14, %c0_15] : memref<64x1xf32, #tpu.memory_space<vmem>>, vector<64x1xf32>
    tpu.vector_store %arg5[%c0_14, %c0_15], %17 {strides = array<i32>} : memref<64x1xf32, #tpu.memory_space<vmem>>, vector<64x1xf32>,
    return
  }
  func.func @transform_0(%arg0: i32) -> (i32, i32) {
    %c0_i32 = arith.constant 0 : i32
    %c0_i32_0 = arith.constant 0 : i32
    %c0_i32_1 = arith.constant 0 : i32
    return %c0_i32, %c0_i32_0 : i32, i32
  }
  func.func @transform_1(%arg0: i32) -> (i32, i32) {
    %c0_i32 = arith.constant 0 : i32
    %c0_i32_0 = arith.constant 0 : i32
    return %c0_i32, %arg0 : i32, i32
  }
  func.func @transform_2(%arg0: i32) -> (i32, i32) {
    %c0_i32 = arith.constant 0 : i32
    %c0_i32_0 = arith.constant 0 : i32
    return %c0_i32, %arg0 : i32, i32
  }
  func.func @transform_3(%arg0: i32) -> (i32, i32) {
    %c0_i32 = arith.constant 0 : i32
    %c0_i32_0 = arith.constant 0 : i32
    %c0_i32_1 = arith.constant 0 : i32
    return %c0_i32, %c0_i32_0 : i32, i32
  }
  func.func @transform_4(%arg0: i32) -> (i32, i32) {
    %c0_i32 = arith.constant 0 : i32
    %c0_i32_0 = arith.constant 0 : i32
    %c0_i32_1 = arith.constant 0 : i32
    return %c0_i32, %c0_i32_0 : i32, i32
  }
}

</mosaic_0001>

<llo_original>
// kernel: tpu_custom_call.1
$region0: #{tpu_custom_call.1}
  #allocation0 [shape = 'u32[]', space=smem, size = 0x4, offset = 0x4, fixed_abs, tag = 'smem constant byte address 0x4 - core index']
  #allocation1 [shape = 'u32[144,128]{1,0:T(1,128)}', space=vmem, size = 0x12000, scoped, tag = 'internal scratch']
  %s0 = inlined_call_operand.vmem [shape: bf16[64,40], index: 0, kind: input, shape index: {}]
  %s1 = inlined_call_operand.hbm [shape: bf16[40,512], index: 1, kind: input, shape index: {}]
  %s2 = inlined_call_operand.hbm [shape: bf16[64,512], index: 2, kind: output, shape index: {0}]
  %s3 = inlined_call_operand.vmem [shape: f32[64,1], index: 3, kind: output, shape index: {1}]
  %s4 = inlined_call_operand.vmem [shape: f32[64,1], index: 4, kind: output, shape index: {2}]
  %5 = xla_tuple %s2, %s3, %s4
  %s6 = sld [smem:[#allocation0]]
  $region42: #{tpu_custom_call.1} parent=0
    _
  %s8 = ssub.s32 1, %s6
  %s9 = scalar_select 0, %s8, %s6
  $region1: #{tpu_custom_call.1} parent=0
    #allocation2 [shape = 'u8[40960]{0}', space=vmem, size = 0xa000, scoped, tag = 'input window, operand 1, single buffered']
    #allocation3 [shape = 's32[1]{0}', space=sflag, size = 0x4, scoped, tag = 'scoped memory for tpu_custom_call.1']
    #allocation4 [shape = 's32[1]{0}', space=sflag, size = 0x4, scoped, tag = 'scoped memory for tpu_custom_call.1']
    #allocation5 [shape = 'u8[65536]{0}', space=vmem, size = 0x10000, scoped, tag = 'output window, operand 0, single buffered']
    %10 = vsyncpa [#allocation3], 0
    %11 = vsyncpa [#allocation4], 0
    // Predicated region
    $region2: #{tpu_custom_call.1} parent=1 // pred_check
      _
    $region3: #{tpu_custom_call.1} parent=1 // pred_check_branch
      %13 = sbr.rel (0) target = $region5
    $region4: #{tpu_custom_call.1} parent=1 // pred_region
      _
    $region5: #{tpu_custom_call.1} parent=1 // pred_fallthru
      _
    // Predicated region
    $region6: #{tpu_custom_call.1} parent=1 // pred_check
      _
    $region7: #{tpu_custom_call.1} parent=1 // pred_check_branch
      %15 = sbr.rel (0) target = $region9
    $region8: #{tpu_custom_call.1} parent=1 // pred_region
      %s17 = ssub.s32 1280, 1280
      %18 = vsyncadd [#allocation3], %s17
      %s19 = sshll.u32 [#allocation2], 4
      %s20 = int_to_ptr.vmem [resolvable:$true] %s19
      %25 = dma.hbm_to_vmem [thread:$0]  %s1, 1280, %s20, [#allocation3], 256, 256, 16
    $region9: #{tpu_custom_call.1} parent=1 // pred_fallthru
      _
    // Predicated region
    $region10: #{tpu_custom_call.1} parent=1 // pred_check
      _
    $region11: #{tpu_custom_call.1} parent=1 // pred_check_branch
      %27 = sbr.rel (0) target = $region13
    $region12: #{tpu_custom_call.1} parent=1 // pred_region
      %28 = dma.done [#allocation3], 1280
    $region13: #{tpu_custom_call.1} parent=1 // pred_fallthru
      _
    %v30 = vld [vmem:[%s0] sm:$0xf]
    %v31 = vld [vmem:[%s0 + $0x4] sm:$0xf]
    %v32 = vld [vmem:[%s0 + $0x8] sm:$0xf]
    %v33 = vld [vmem:[%s0 + $0xc] sm:$0xf]
    %v34 = vld [vmem:[%s0 + $0x10] sm:$0xf]
    %v35 = vld [vmem:[%s0 + $0x14] sm:$0xf]
    %v36 = vld [vmem:[%s0 + $0x18] sm:$0xf]
    %v37 = vld [vmem:[%s0 + $0x1c] sm:$0xf]
    %v38 = vld [vmem:[#allocation2] sm:$0xff]
    %v39 = vld [vmem:[#allocation2 + $0x8] sm:$0xff]
    %v40 = vld [vmem:[#allocation2 + $0x10] sm:$0xff]
    %v41 = vld [vmem:[#allocation2 + $0x18] sm:$0xff]
    %v42 = vld [vmem:[#allocation2 + $0x20] sm:$0xff]
    %v43 = vld [vmem:[#allocation2 + $0x28] sm:$0xff]
    %v44 = vld [vmem:[#allocation2 + $0x30] sm:$0xff]
    %v45 = vld [vmem:[#allocation2 + $0x38] sm:$0xff]
    %v46 = vld [vmem:[#allocation2 + $0x40] sm:$0xff]
    %v47 = vld [vmem:[#allocation2 + $0x48] sm:$0xff]
    %v56 = vunpack.c.l.b16 %v30
    %v57 = vunpack.c.l.b16 %v31
    %v58 = vunpack.c.l.b16 %v32
    %v59 = vunpack.c.l.b16 %v33
    %v60 = vunpack.c.l.b16 %v34
    %v61 = vunpack.c.l.b16 %v35
    %v62 = vunpack.c.l.b16 %v36
    %v63 = vunpack.c.l.b16 %v37
    %v64 = vpack.c.b16 %v57, %v56
    %v65 = vpack.c.b16 %v59, %v58
    %v66 = vpack.c.b16 %v61, %v60
    %v67 = vpack.c.b16 %v63, %v62
    %v78 = vunpack.c.l.b16 %v38
    %v79 = vunpack.c.h.b16 %v38
    %v80 = vunpack.c.l.b16 %v39
    %v81 = vunpack.c.h.b16 %v39
    %v82 = vunpack.c.l.b16 %v40
    %v83 = vunpack.c.h.b16 %v40
    %v84 = vunpack.c.l.b16 %v41
    %v85 = vunpack.c.h.b16 %v41
    %v86 = vunpack.c.l.b16 %v42
    %v87 = vunpack.c.h.b16 %v42
    %v88 = vunpack.c.l.b16 %v43
    %v89 = vunpack.c.h.b16 %v43
    %v90 = vunpack.c.l.b16 %v44
    %v91 = vunpack.c.h.b16 %v44
    %v92 = vunpack.c.l.b16 %v45
    %v93 = vunpack.c.h.b16 %v45
    %v94 = vunpack.c.l.b16 %v46
    %v95 = vunpack.c.h.b16 %v46
    %v96 = vunpack.c.l.b16 %v47
    %v97 = vunpack.c.h.b16 %v47
    %v98 = vpack.c.b16 %v82, %v78
    %v99 = vpack.c.b16 %v83, %v79
    %v100 = vpack.c.b16 %v84, %v80
    %v101 = vpack.c.b16 %v85, %v81
    %v102 = vpack.c.b16 %v90, %v86
    %v103 = vpack.c.b16 %v91, %v87
    %v104 = vpack.c.b16 %v92, %v88
    %v105 = vpack.c.b16 %v93, %v89
    %v106 = vpack.c.b16 %v94, %v94
    %v107 = vpack.c.b16 %v95, %v95
    %v108 = vpack.c.b16 %v96, %v96
    %v109 = vpack.c.b16 %v97, %v97
    %vm118 = vcmask 326656
    %v120 = vsel %vm118, %v64, 0
    %v123 = vsel %vm118, %v65, 0
    %v126 = vsel %vm118, %v66, 0
    %v129 = vsel %vm118, %v67, 0
    %vm131 = vcmask 1043456
    %v133 = vsel %vm131, %v106, 0
    %v136 = vsel %vm131, %v107, 0
    %v139 = vsel %vm131, %v108, 0
    %v142 = vsel %vm131, %v109, 0
    %144 = vmatprep.subr.bf16.mxu0 0
    %145 = vmatpush1.bf16.msra.mxu0 0
    %146 = vmatprep.subr.bf16.mxu0 0
    %147 = vmatpush1.bf16.msra.mxu0 0
    %148 = vmatprep.subr.bf16.mxu0 0
    %149 = vmatpush1.bf16.msra.mxu0 0
    %150 = vmatprep.subr.bf16.mxu0 0
    %151 = vmatpush1.bf16.msra.mxu0 0
    %152 = vmatprep.subr.bf16.mxu0 0
    %153 = vmatpush1.bf16.msra.mxu0 0
    %154 = vmatprep.subr.bf16.mxu0 %v136
    %155 = vmatpush1.bf16.msra.mxu0 %v133
    %156 = vmatprep.subr.bf16.mxu0 %v103
    %157 = vmatpush1.bf16.msra.mxu0 %v102
    %158 = vmatprep.subr.bf16.mxu0 %v99
    %159 = vmatpush1.bf16.msra.mxu0 %v98
    %160 = vmatprep.subr.bf16.mxu0 0
    %161 = vmatpush2.bf16.msra.mxu0 0
    %162 = vmatprep.subr.bf16.mxu0 0
    %163 = vmatpush2.bf16.msra.mxu0 0
    %164 = vmatprep.subr.bf16.mxu0 0
    %165 = vmatpush2.bf16.msra.mxu0 0
    %166 = vmatprep.subr.bf16.mxu0 0
    %167 = vmatpush2.bf16.msra.mxu0 0
    %168 = vmatprep.subr.bf16.mxu0 0
    %169 = vmatpush2.bf16.msra.mxu0 0
    %170 = vmatprep.subr.bf16.mxu0 0
    %171 = vmatpush2.bf16.msra.mxu0 0
    %172 = vmatprep.subr.bf16.mxu0 0
    %173 = vmatpush2.bf16.msra.mxu0 0
    %174 = vmatprep.subr.bf16.mxu0 0
    %175 = vmatpush2.bf16.msra.mxu0 0
    %176 = vmatprep.mubr.bf16.mxu0 0
    %177 = vmatmul.mubr.bf16.gmra.mxu0 %v120
    %v178 = vpop.f32.mrf.mxu0
    %v179 = vadd.f32 0.0, %v178
    %v180 = vpop.f32.mrf.mxu0
    %v181 = vadd.f32 0.0, %v180
    %v182 = vpop.f32.mrf.mxu0
    %v183 = vadd.f32 0.0, %v182
    %v184 = vpop.f32.mrf.mxu0
    %v185 = vadd.f32 0.0, %v184
    %186 = vmatprep.mubr.bf16.mxu0 0
    %187 = vmatmul.mubr.bf16.gmra.mxu0 %v123
    %v188 = vpop.f32.mrf.mxu0
    %v189 = vadd.f32 0.0, %v188
    %v190 = vpop.f32.mrf.mxu0
    %v191 = vadd.f32 0.0, %v190
    %v192 = vpop.f32.mrf.mxu0
    %v193 = vadd.f32 0.0, %v192
    %v194 = vpop.f32.mrf.mxu0
    %v195 = vadd.f32 0.0, %v194
    %196 = vmatprep.mubr.bf16.mxu0 0
    %197 = vmatmul.mubr.bf16.gmra.mxu0 %v126
    %v198 = vpop.f32.mrf.mxu0
    %v199 = vadd.f32 0.0, %v198
    %v200 = vpop.f32.mrf.mxu0
    %v201 = vadd.f32 0.0, %v200
    %v202 = vpop.f32.mrf.mxu0
    %v203 = vadd.f32 0.0, %v202
    %v204 = vpop.f32.mrf.mxu0
    %v205 = vadd.f32 0.0, %v204
    %206 = vmatprep.mubr.bf16.mxu0 0
    %207 = vmatmul.mubr.bf16.gmra.mxu0 %v129
    %v208 = vpop.f32.mrf.mxu0
    %v209 = vadd.f32 0.0, %v208
    %v210 = vpop.f32.mrf.mxu0
    %v211 = vadd.f32 0.0, %v210
    %v212 = vpop.f32.mrf.mxu0
    %v213 = vadd.f32 0.0, %v212
    %v214 = vpop.f32.mrf.mxu0
    %v215 = vadd.f32 0.0, %v214
    %216 = vdwg.mxu0
    %217 = vmatprep.subr.bf16.mxu0 0
    %218 = vmatpush1.bf16.msra.mxu0 0
    %219 = vmatprep.subr.bf16.mxu0 0
    %220 = vmatpush1.bf16.msra.mxu0 0
    %221 = vmatprep.subr.bf16.mxu0 0
    %222 = vmatpush1.bf16.msra.mxu0 0
    %223 = vmatprep.subr.bf16.mxu0 0
    %224 = vmatpush1.bf16.msra.mxu0 0
    %225 = vmatprep.subr.bf16.mxu0 0
    %226 = vmatpush1.bf16.msra.mxu0 0
    %227 = vmatprep.subr.bf16.mxu0 %v142
    %228 = vmatpush1.bf16.msra.mxu0 %v139
    %229 = vmatprep.subr.bf16.mxu0 %v105
    %230 = vmatpush1.bf16.msra.mxu0 %v104
    %231 = vmatprep.subr.bf16.mxu0 %v101
    %232 = vmatpush1.bf16.msra.mxu0 %v100
    %233 = vmatprep.subr.bf16.mxu0 0
    %234 = vmatpush2.bf16.msra.mxu0 0
    %235 = vmatprep.subr.bf16.mxu0 0
    %236 = vmatpush2.bf16.msra.mxu0 0
    %237 = vmatprep.subr.bf16.mxu0 0
    %238 = vmatpush2.bf16.msra.mxu0 0
    %239 = vmatprep.subr.bf16.mxu0 0
    %240 = vmatpush2.bf16.msra.mxu0 0
    %241 = vmatprep.subr.bf16.mxu0 0
    %242 = vmatpush2.bf16.msra.mxu0 0
    %243 = vmatprep.subr.bf16.mxu0 0
    %244 = vmatpush2.bf16.msra.mxu0 0
    %245 = vmatprep.subr.bf16.mxu0 0
    %246 = vmatpush2.bf16.msra.mxu0 0
    %247 = vmatprep.subr.bf16.mxu0 0
    %248 = vmatpush2.bf16.msra.mxu0 0
    %249 = vmatprep.mubr.bf16.mxu0 0
    %250 = vmatmul.mubr.bf16.gmra.mxu0 %v120
    %v251 = vpop.f32.mrf.mxu0
    %v252 = vadd.f32 0.0, %v251
    %v253 = vpop.f32.mrf.mxu0
    %v254 = vadd.f32 0.0, %v253
    %v255 = vpop.f32.mrf.mxu0
    %v256 = vadd.f32 0.0, %v255
    %v257 = vpop.f32.mrf.mxu0
    %v258 = vadd.f32 0.0, %v257
    %259 = vmatprep.mubr.bf16.mxu0 0
    %260 = vmatmul.mubr.bf16.gmra.mxu0 %v123
    %v261 = vpop.f32.mrf.mxu0
    %v262 = vadd.f32 0.0, %v261
    %v263 = vpop.f32.mrf.mxu0
    %v264 = vadd.f32 0.0, %v263
    %v265 = vpop.f32.mrf.mxu0
    %v266 = vadd.f32 0.0, %v265
    %v267 = vpop.f32.mrf.mxu0
    %v268 = vadd.f32 0.0, %v267
    %269 = vmatprep.mubr.bf16.mxu0 0
    %270 = vmatmul.mubr.bf16.gmra.mxu0 %v126
    %v271 = vpop.f32.mrf.mxu0
    %v272 = vadd.f32 0.0, %v271
    %v273 = vpop.f32.mrf.mxu0
    %v274 = vadd.f32 0.0, %v273
    %v275 = vpop.f32.mrf.mxu0
    %v276 = vadd.f32 0.0, %v275
    %v277 = vpop.f32.mrf.mxu0
    %v278 = vadd.f32 0.0, %v277
    %279 = vmatprep.mubr.bf16.mxu0 0
    %280 = vmatmul.mubr.bf16.gmra.mxu0 %v129
    %v281 = vpop.f32.mrf.mxu0
    %v282 = vadd.f32 0.0, %v281
    %v283 = vpop.f32.mrf.mxu0
    %v284 = vadd.f32 0.0, %v283
    %v285 = vpop.f32.mrf.mxu0
    %v286 = vadd.f32 0.0, %v285
    %v287 = vpop.f32.mrf.mxu0
    %v288 = vadd.f32 0.0, %v287
    %289 = vdwg.mxu0
    %v290 = vpack.c.bf16 %v183, %v179
    %v291 = vpack.c.bf16 %v185, %v181
    %v292 = vpack.c.bf16 %v256, %v252
    %v293 = vpack.c.bf16 %v258, %v254
    %v294 = vpack.c.bf16 %v193, %v189
    %v295 = vpack.c.bf16 %v195, %v191
    %v296 = vpack.c.bf16 %v266, %v262
    %v297 = vpack.c.bf16 %v268, %v264
    %v298 = vpack.c.bf16 %v203, %v199
    %v299 = vpack.c.bf16 %v205, %v201
    %v300 = vpack.c.bf16 %v276, %v272
    %v301 = vpack.c.bf16 %v278, %v274
    %v302 = vpack.c.bf16 %v213, %v209
    %v303 = vpack.c.bf16 %v215, %v211
    %v304 = vpack.c.bf16 %v286, %v282
    %v305 = vpack.c.bf16 %v288, %v284
    %v322 = vunpack.c.l.b16 %v290
    %v323 = vunpack.c.l.b16 %v291
    %v324 = vunpack.c.l.b16 %v292
    %v325 = vunpack.c.l.b16 %v293
    %v326 = vunpack.c.h.b16 %v290
    %v327 = vunpack.c.h.b16 %v291
    %v328 = vunpack.c.h.b16 %v292
    %v329 = vunpack.c.h.b16 %v293
    %v330 = vunpack.c.l.b16 %v294
    %v331 = vunpack.c.l.b16 %v295
    %v332 = vunpack.c.l.b16 %v296
    %v333 = vunpack.c.l.b16 %v297
    %v334 = vunpack.c.h.b16 %v294
    %v335 = vunpack.c.h.b16 %v295
    %v336 = vunpack.c.h.b16 %v296
    %v337 = vunpack.c.h.b16 %v297
    %v338 = vunpack.c.l.b16 %v298
    %v339 = vunpack.c.l.b16 %v299
    %v340 = vunpack.c.l.b16 %v300
    %v341 = vunpack.c.l.b16 %v301
    %v342 = vunpack.c.h.b16 %v298
    %v343 = vunpack.c.h.b16 %v299
    %v344 = vunpack.c.h.b16 %v300
    %v345 = vunpack.c.h.b16 %v301
    %v346 = vunpack.c.l.b16 %v302
    %v347 = vunpack.c.l.b16 %v303
    %v348 = vunpack.c.l.b16 %v304
    %v349 = vunpack.c.l.b16 %v305
    %v350 = vunpack.c.h.b16 %v302
    %v351 = vunpack.c.h.b16 %v303
    %v352 = vunpack.c.h.b16 %v304
    %v353 = vunpack.c.h.b16 %v305
    %v354 = vpack.c.b16 %v323, %v322
    %v355 = vpack.c.b16 %v325, %v324
    %v356 = vpack.c.b16 %v327, %v326
    %v357 = vpack.c.b16 %v329, %v328
    %v358 = vpack.c.b16 %v331, %v330
    %v359 = vpack.c.b16 %v333, %v332
    %v360 = vpack.c.b16 %v335, %v334
    %v361 = vpack.c.b16 %v337, %v336
    %v362 = vpack.c.b16 %v339, %v338
    %v363 = vpack.c.b16 %v341, %v340
    %v364 = vpack.c.b16 %v343, %v342
    %v365 = vpack.c.b16 %v345, %v344
    %v366 = vpack.c.b16 %v347, %v346
    %v367 = vpack.c.b16 %v349, %v348
    %v368 = vpack.c.b16 %v351, %v350
    %v369 = vpack.c.b16 %v353, %v352
    %386 = vst [vmem:[#allocation5] sm:$0xff] %v354
    %387 = vst [vmem:[#allocation5 + $0x8] sm:$0xff] %v355
    %388 = vst [vmem:[#allocation5 + $0x10] sm:$0xff] %v356
    %389 = vst [vmem:[#allocation5 + $0x18] sm:$0xff] %v357
    %390 = vst [vmem:[#allocation5 + $0x20] sm:$0xff] %v358
    %391 = vst [vmem:[#allocation5 + $0x28] sm:$0xff] %v359
    %392 = vst [vmem:[#allocation5 + $0x30] sm:$0xff] %v360
    %393 = vst [vmem:[#allocation5 + $0x38] sm:$0xff] %v361
    %394 = vst [vmem:[#allocation5 + $0x40] sm:$0xff] %v362
    %395 = vst [vmem:[#allocation5 + $0x48] sm:$0xff] %v363
    %396 = vst [vmem:[#allocation5 + $0x50] sm:$0xff] %v364
    %397 = vst [vmem:[#allocation5 + $0x58] sm:$0xff] %v365
    %398 = vst [vmem:[#allocation5 + $0x60] sm:$0xff] %v366
    %399 = vst [vmem:[#allocation5 + $0x68] sm:$0xff] %v367
    %400 = vst [vmem:[#allocation5 + $0x70] sm:$0xff] %v368
    %401 = vst [vmem:[#allocation5 + $0x78] sm:$0xff] %v369
    %p402 = scmp.eq.s32.totalorder 0, 0
    // Predicated region
    $region14: #{tpu_custom_call.1} parent=1 // pred_check
      %p403 = pneg %p402
    $region15: #{tpu_custom_call.1} parent=1 // pred_check_branch
      %405 = sbr.rel (%p403) target = $region17
    $region16: #{tpu_custom_call.1} parent=1 // pred_region
      %vm406 = vcmask 7168
      %407 = vst.msk [vmem:[%s3] sm:$0xff] %vm406, 0.0
      %408 = vst.msk [vmem:[%s3 + $0x8] sm:$0xff] %vm406, 0.0
      %409 = vst.msk [vmem:[%s3 + $0x10] sm:$0xff] %vm406, 0.0
      %410 = vst.msk [vmem:[%s3 + $0x18] sm:$0xff] %vm406, 0.0
      %411 = vst.msk [vmem:[%s3 + $0x20] sm:$0xff] %vm406, 0.0
      %412 = vst.msk [vmem:[%s3 + $0x28] sm:$0xff] %vm406, 0.0
      %413 = vst.msk [vmem:[%s3 + $0x30] sm:$0xff] %vm406, 0.0
      %414 = vst.msk [vmem:[%s3 + $0x38] sm:$0xff] %vm406, 0.0
      %415 = vst.msk [vmem:[%s4] sm:$0xff] %vm406, 0.0
      %416 = vst.msk [vmem:[%s4 + $0x8] sm:$0xff] %vm406, 0.0
      %417 = vst.msk [vmem:[%s4 + $0x10] sm:$0xff] %vm406, 0.0
      %418 = vst.msk [vmem:[%s4 + $0x18] sm:$0xff] %vm406, 0.0
      %419 = vst.msk [vmem:[%s4 + $0x20] sm:$0xff] %vm406, 0.0
      %420 = vst.msk [vmem:[%s4 + $0x28] sm:$0xff] %vm406, 0.0
      %421 = vst.msk [vmem:[%s4 + $0x30] sm:$0xff] %vm406, 0.0
      %422 = vst.msk [vmem:[%s4 + $0x38] sm:$0xff] %vm406, 0.0
    $region17: #{tpu_custom_call.1} parent=1 // pred_fallthru
      _
    %v423 = vld [vmem:[%s3] sm:$0xff]
    %v424 = vld [vmem:[%s3 + $0x8] sm:$0xff]
    %v425 = vld [vmem:[%s3 + $0x10] sm:$0xff]
    %v426 = vld [vmem:[%s3 + $0x18] sm:$0xff]
    %v427 = vld [vmem:[%s3 + $0x20] sm:$0xff]
    %v428 = vld [vmem:[%s3 + $0x28] sm:$0xff]
    %v429 = vld [vmem:[%s3 + $0x30] sm:$0xff]
    %v430 = vld [vmem:[%s3 + $0x38] sm:$0xff]
    %v431 = vadd.f32 %v179, %v181
    %v432 = vadd.f32 %v431, %v252
    %v433 = vadd.f32 %v432, %v254
    %434 = vadd.xlane.f32.xlu0 %v433
    %v435 = vpop.xlane.xlu0 %434
    %v436 = vadd.f32 %v183, %v185
    %v437 = vadd.f32 %v436, %v256
    %v438 = vadd.f32 %v437, %v258
    %439 = vadd.xlane.f32.xlu0 %v438
    %v440 = vpop.xlane.xlu0 %439
    %v441 = vadd.f32 %v189, %v191
    %v442 = vadd.f32 %v441, %v262
    %v443 = vadd.f32 %v442, %v264
    %444 = vadd.xlane.f32.xlu0 %v443
    %v445 = vpop.xlane.xlu0 %444
    %v446 = vadd.f32 %v193, %v195
    %v447 = vadd.f32 %v446, %v266
    %v448 = vadd.f32 %v447, %v268
    %449 = vadd.xlane.f32.xlu0 %v448
    %v450 = vpop.xlane.xlu0 %449
    %v451 = vadd.f32 %v199, %v201
    %v452 = vadd.f32 %v451, %v272
    %v453 = vadd.f32 %v452, %v274
    %454 = vadd.xlane.f32.xlu0 %v453
    %v455 = vpop.xlane.xlu0 %454
    %v456 = vadd.f32 %v203, %v205
    %v457 = vadd.f32 %v456, %v276
    %v458 = vadd.f32 %v457, %v278
    %459 = vadd.xlane.f32.xlu0 %v458
    %v460 = vpop.xlane.xlu0 %459
    %v461 = vadd.f32 %v209, %v211
    %v462 = vadd.f32 %v461, %v282
    %v463 = vadd.f32 %v462, %v284
    %464 = vadd.xlane.f32.xlu0 %v463
    %v465 = vpop.xlane.xlu0 %464
    %v466 = vadd.f32 %v213, %v215
    %v467 = vadd.f32 %v466, %v286
    %v468 = vadd.f32 %v467, %v288
    %469 = vadd.xlane.f32.xlu0 %v468
    %v470 = vpop.xlane.xlu0 %469
    %v471 = vadd.f32 %v423, %v435
    %v472 = vadd.f32 %v424, %v440
    %v473 = vadd.f32 %v425, %v445
    %v474 = vadd.f32 %v426, %v450
    %v475 = vadd.f32 %v427, %v455
    %v476 = vadd.f32 %v428, %v460
    %v477 = vadd.f32 %v429, %v465
    %v478 = vadd.f32 %v430, %v470
    %vm479 = vcmask 7168
    %480 = vst.msk [vmem:[%s3] sm:$0xff] %vm479, %v471
    %481 = vst.msk [vmem:[%s3 + $0x8] sm:$0xff] %vm479, %v472
    %482 = vst.msk [vmem:[%s3 + $0x10] sm:$0xff] %vm479, %v473
    %483 = vst.msk [vmem:[%s3 + $0x18] sm:$0xff] %vm479, %v474
    %484 = vst.msk [vmem:[%s3 + $0x20] sm:$0xff] %vm479, %v475
    %485 = vst.msk [vmem:[%s3 + $0x28] sm:$0xff] %vm479, %v476
    %486 = vst.msk [vmem:[%s3 + $0x30] sm:$0xff] %vm479, %v477
    %487 = vst.msk [vmem:[%s3 + $0x38] sm:$0xff] %vm479, %v478
    %v488 = vld [vmem:[%s4] sm:$0xff]
    %v489 = vld [vmem:[%s4 + $0x8] sm:$0xff]
    %v490 = vld [vmem:[%s4 + $0x10] sm:$0xff]
    %v491 = vld [vmem:[%s4 + $0x18] sm:$0xff]
    %v492 = vld [vmem:[%s4 + $0x20] sm:$0xff]
    %v493 = vld [vmem:[%s4 + $0x28] sm:$0xff]
    %v494 = vld [vmem:[%s4 + $0x30] sm:$0xff]
    %v495 = vld [vmem:[%s4 + $0x38] sm:$0xff]
    %v496 = vmul.f32 %v179, %v179
    %v497 = vmul.f32 %v181, %v181
    %v498 = vmul.f32 %v252, %v252
    %v499 = vmul.f32 %v254, %v254
    %v500 = vmul.f32 %v183, %v183
    %v501 = vmul.f32 %v185, %v185
    %v502 = vmul.f32 %v256, %v256
    %v503 = vmul.f32 %v258, %v258
    %v504 = vmul.f32 %v189, %v189
    %v505 = vmul.f32 %v191, %v191
    %v506 = vmul.f32 %v262, %v262
    %v507 = vmul.f32 %v264, %v264
    %v508 = vmul.f32 %v193, %v193
    %v509 = vmul.f32 %v195, %v195
    %v510 = vmul.f32 %v266, %v266
    %v511 = vmul.f32 %v268, %v268
    %v512 = vmul.f32 %v199, %v199
    %v513 = vmul.f32 %v201, %v201
    %v514 = vmul.f32 %v272, %v272
    %v515 = vmul.f32 %v274, %v274
    %v516 = vmul.f32 %v203, %v203
    %v517 = vmul.f32 %v205, %v205
    %v518 = vmul.f32 %v276, %v276
    %v519 = vmul.f32 %v278, %v278
    %v520 = vmul.f32 %v209, %v209
    %v521 = vmul.f32 %v211, %v211
    %v522 = vmul.f32 %v282, %v282
    %v523 = vmul.f32 %v284, %v284
    %v524 = vmul.f32 %v213, %v213
    %v525 = vmul.f32 %v215, %v215
    %v526 = vmul.f32 %v286, %v286
    %v527 = vmul.f32 %v288, %v288
    %v528 = vadd.f32 %v496, %v497
    %v529 = vadd.f32 %v528, %v498
    %v530 = vadd.f32 %v529, %v499
    %531 = vadd.xlane.f32.xlu0 %v530
    %v532 = vpop.xlane.xlu0 %531
    %v533 = vadd.f32 %v500, %v501
    %v534 = vadd.f32 %v533, %v502
    %v535 = vadd.f32 %v534, %v503
    %536 = vadd.xlane.f32.xlu0 %v535
    %v537 = vpop.xlane.xlu0 %536
    %v538 = vadd.f32 %v504, %v505
    %v539 = vadd.f32 %v538, %v506
    %v540 = vadd.f32 %v539, %v507
    %541 = vadd.xlane.f32.xlu0 %v540
    %v542 = vpop.xlane.xlu0 %541
    %v543 = vadd.f32 %v508, %v509
    %v544 = vadd.f32 %v543, %v510
    %v545 = vadd.f32 %v544, %v511
    %546 = vadd.xlane.f32.xlu0 %v545
    %v547 = vpop.xlane.xlu0 %546
    %v548 = vadd.f32 %v512, %v513
    %v549 = vadd.f32 %v548, %v514
    %v550 = vadd.f32 %v549, %v515
    %551 = vadd.xlane.f32.xlu0 %v550
    %v552 = vpop.xlane.xlu0 %551
    %v553 = vadd.f32 %v516, %v517
    %v554 = vadd.f32 %v553, %v518
    %v555 = vadd.f32 %v554, %v519
    %556 = vadd.xlane.f32.xlu0 %v555
    %v557 = vpop.xlane.xlu0 %556
    %v558 = vadd.f32 %v520, %v521
    %v559 = vadd.f32 %v558, %v522
    %v560 = vadd.f32 %v559, %v523
    %561 = vadd.xlane.f32.xlu0 %v560
    %v562 = vpop.xlane.xlu0 %561
    %v563 = vadd.f32 %v524, %v525
    %v564 = vadd.f32 %v563, %v526
    %v565 = vadd.f32 %v564, %v527
    %566 = vadd.xlane.f32.xlu0 %v565
    %v567 = vpop.xlane.xlu0 %566
    %v568 = vadd.f32 %v488, %v532
    %v569 = vadd.f32 %v489, %v537
    %v570 = vadd.f32 %v490, %v542
    %v571 = vadd.f32 %v491, %v547
    %v572 = vadd.f32 %v492, %v552
    %v573 = vadd.f32 %v493, %v557
    %v574 = vadd.f32 %v494, %v562
    %v575 = vadd.f32 %v495, %v567
    %576 = vst.msk [vmem:[%s4] sm:$0xff] %vm479, %v568
    %577 = vst.msk [vmem:[%s4 + $0x8] sm:$0xff] %vm479, %v569
    %578 = vst.msk [vmem:[%s4 + $0x10] sm:$0xff] %vm479, %v570
    %579 = vst.msk [vmem:[%s4 + $0x18] sm:$0xff] %vm479, %v571
    %580 = vst.msk [vmem:[%s4 + $0x20] sm:$0xff] %vm479, %v572
    %581 = vst.msk [vmem:[%s4 + $0x28] sm:$0xff] %vm479, %v573
    %582 = vst.msk [vmem:[%s4 + $0x30] sm:$0xff] %vm479, %v574
    %583 = vst.msk [vmem:[%s4 + $0x38] sm:$0xff] %vm479, %v575
    // Predicated region
    $region18: #{tpu_custom_call.1} parent=1 // pred_check
      _
    $region19: #{tpu_custom_call.1} parent=1 // pred_check_branch
      %585 = sbr.rel (0) target = $region21
    $region20: #{tpu_custom_call.1} parent=1 // pred_region
      %s587 = ssub.s32 2048, 2048
      %588 = vsyncadd [#allocation4], %s587
      %s589 = sshll.u32 [#allocation5], 4
      %s590 = int_to_ptr.vmem [resolvable:$true] %s589
      %595 = dma.vmem_to_hbm [thread:$0]  %s590, 2048, %s2, [#allocation4], 256, 256, 16
    $region21: #{tpu_custom_call.1} parent=1 // pred_fallthru
      _
    // Predicated region
    $region22: #{tpu_custom_call.1} parent=1 // pred_check
      _
    $region23: #{tpu_custom_call.1} parent=1 // pred_check_branch
      %597 = sbr.rel (0) target = $region25
    $region24: #{tpu_custom_call.1} parent=1 // pred_region
      _
    $region25: #{tpu_custom_call.1} parent=1 // pred_fallthru
      _
    // Predicated region
    $region26: #{tpu_custom_call.1} parent=1 // pred_check
      _
    $region27: #{tpu_custom_call.1} parent=1 // pred_check_branch
      %599 = sbr.rel (0) target = $region29
    $region28: #{tpu_custom_call.1} parent=1 // pred_region
      _
    $region29: #{tpu_custom_call.1} parent=1 // pred_fallthru
      _
    // Predicated region
    $region30: #{tpu_custom_call.1} parent=1 // pred_check
      _
    $region31: #{tpu_custom_call.1} parent=1 // pred_check_branch
      %601 = sbr.rel (0) target = $region33
    $region32: #{tpu_custom_call.1} parent=1 // pred_region
      %602 = dma.done [#allocation4], 2048
    $region33: #{tpu_custom_call.1} parent=1 // pred_fallthru
      _
    // Predicated region
    $region34: #{tpu_custom_call.1} parent=1 // pred_check
      _
    $region35: #{tpu_custom_call.1} parent=1 // pred_check_branch
      %604 = sbr.rel (0) target = $region37
    $region36: #{tpu_custom_call.1} parent=1 // pred_region
      _
    $region37: #{tpu_custom_call.1} parent=1 // pred_fallthru
      _
    // Predicated region
    $region38: #{tpu_custom_call.1} parent=1 // pred_check
      _
    $region39: #{tpu_custom_call.1} parent=1 // pred_check_branch
      %606 = sbr.rel (0) target = $region41
    $region40: #{tpu_custom_call.1} parent=1 // pred_region
      _
    $region41: #{tpu_custom_call.1} parent=1 // pred_fallthru
      _
    %607 = vsyncpa [#allocation3], 1
    %608 = vsyncpa [#allocation4], 1

</llo_original>
